<compile_context>
chip_gen: v5e
topology: v5e:2x2
jax: 0.10.0
libtpu: 0.0.40
codegen_flags: <defaults>
</compile_context>

<pallas_src>
import functools

import jax
import jax.numpy as jnp
from jax.experimental import pallas as pl
from jax.experimental.pallas import tpu as pltpu

NUM_CLASSES = 1
NUM_ANCHORS = 5

# Darknet19 layer configuration (cin, cout, ksize) / 'M' = maxpool 2x2
_DARKNET_CFG = {
    "layer0": [(3, 32, 3)],
    "layer1": ["M", (32, 64, 3)],
    "layer2": ["M", (64, 128, 3), (128, 64, 1), (64, 128, 3)],
    "layer3": ["M", (128, 256, 3), (256, 128, 1), (128, 256, 3)],
    "layer4": ["M", (256, 512, 3), (512, 256, 1), (256, 512, 3),
               (512, 256, 1), (256, 512, 3)],
    "layer5": ["M", (512, 1024, 3), (1024, 512, 1), (512, 1024, 3),
               (1024, 512, 1), (512, 1024, 3)],
}


def _round_up(x, m):
    return (x + m - 1) // m * m


def _round_down(x, m):
    return x // m * m


@functools.lru_cache(maxsize=None)
def _vmem_limit_bytes():
    """Generation-aware scoped VMEM limit: ~5/8 of physical, 32 MiB fallback."""
    cap = 0
    try:
        info = pltpu.get_tpu_info()
        cap = int(getattr(info, "vmem_capacity_bytes", 0) or 0)
    except Exception:
        cap = 0
    if cap <= 0:
        return 32 * 1024 * 1024
    return int(min(96 * 1024 * 1024, max(32 * 1024 * 1024, cap * 5 // 8)))


# ----------------------------------------------------------------------------
# Pallas kernels
# ----------------------------------------------------------------------------
def _mm_bn_act_multi_k_kernel(a_ref, b_ref, scale_ref, bias_ref, o_ref,
                              acc_ref, *, leaky):
    """Tiled bf16 matmul, f32 accumulation over K, fused BN + LeakyReLU."""
    @pl.when(pl.program_id(2) == 0)
    def _():
        acc_ref[...] = jnp.zeros_like(acc_ref)

    acc_ref[...] += jnp.dot(a_ref[...], b_ref[...],
                            preferred_element_type=jnp.float32)

    @pl.when(pl.program_id(2) == pl.num_programs(2) - 1)
    def _():
        y = acc_ref[...] * scale_ref[...] + bias_ref[...]
        if leaky:
            y = jnp.where(y > 0, y, 0.1 * y)
        o_ref[...] = y.astype(o_ref.dtype)


def _mm_bn_act_single_k_kernel(a_ref, b_ref, scale_ref, bias_ref, o_ref,
                               *, leaky):
    """Single-K-step specialization: no accumulator scratch round trip."""
    y = jnp.dot(a_ref[...], b_ref[...], preferred_element_type=jnp.float32)
    y = y * scale_ref[...] + bias_ref[...]
    if leaky:
        y = jnp.where(y > 0, y, 0.1 * y)
    o_ref[...] = y.astype(o_ref.dtype)


def _maxpool_kernel(x_ref, o_ref, *, c):
    """MaxPool2d(2,2): input block (tr, 2, Wo, 2C) -> output block (tr, Wo, C)."""
    blk = x_ref[...]                                     # (tr, 2, Wo, 2C)
    v = jnp.maximum(blk[:, 0], blk[:, 1])                # vertical max
    o_ref[...] = jnp.maximum(v[..., :c], v[..., c:])     # horizontal max


def _head_kernel(x_ref, o_ref):
    """YOLO head: sigmoid(xy), exp(clamp(wh)), sigmoid(conf), softmax(class).

    Single (rows, 5+C) block in / out.  The tensor is tiny (h*w*anchors rows).
    """
    x = x_ref[...].astype(jnp.float32)
    xy = jax.nn.sigmoid(x[:, 0:2])
    wh = jnp.exp(jnp.clip(x[:, 2:4], -10.0, 10.0))
    conf = jax.nn.sigmoid(x[:, 4:5])
    cls = x[:, 5:]
    if cls.shape[-1] == 1:
        cls = jnp.ones_like(cls)          # softmax over a single class == 1.0
    else:
        m = jnp.max(cls, axis=-1, keepdims=True)
        e = jnp.exp(cls - m)
        cls = e / jnp.sum(e, axis=-1, keepdims=True)
    o_ref[...] = jnp.concatenate([xy, wh, conf, cls], axis=-1)


# ----------------------------------------------------------------------------
# Pallas wrappers
# ----------------------------------------------------------------------------
def _matmul_bn_act(A, Wm, scale, bias, *, leaky, out_dtype):
    """A: (M, K), Wm: (K, N) -> (M, N).  bf16 operands, f32 accumulation."""
    M, K = A.shape
    _, N = Wm.shape

    A = A.astype(jnp.bfloat16)
    Wm = Wm.astype(jnp.bfloat16)
    scale = scale.astype(jnp.float32).reshape(1, N)
    bias = bias.astype(jnp.float32).reshape(1, N)

    # ---- K chunking: 1152 divides 9*Cin for every layer, so Kp == K here ----
    if K <= 1280:
        tk, Kp = K, K
    else:
        steps = -(-K // 1152)
        tk = _round_up(-(-K // steps), 128)
        Kp = _round_up(K, tk)
    if Kp != K:  # zero padding along K is required for correctness
        A = jnp.pad(A, ((0, 0), (0, Kp - K)))
        Wm = jnp.pad(Wm, ((0, Kp - K), (0, 0)))

    # ---- M/N tiles.  No M/N padding round trips: cdiv grids + edge blocks. --
    if M >= 512:
        tm = 512
    elif M >= 256:
        tm = 256
    elif M >= 8:
        tm = _round_down(M, 8)
    else:
        tm = M
    if N >= 512 and M >= 512:
        tn = 512
    elif N >= 256:
        tn = 256
    elif N >= 128:
        tn = 128
    else:
        tn = N  # narrow layers (32 / 64 / 30 channels): full-width block
    # keep >= 2 blocks along a parallel axis when cheap (v7x has 2 TensorCores)
    if pl.cdiv(M, tm) * pl.cdiv(N, tn) == 1 and M >= 16:
        tm = min(_round_up(-(-M // 2), 8), _round_down(M, 8))

    grid_m, grid_n, grid_k = pl.cdiv(M, tm), pl.cdiv(N, tn), Kp // tk
    vmem = _vmem_limit_bytes()

    if grid_k == 1:
        out = pl.pallas_call(
            functools.partial(_mm_bn_act_single_k_kernel, leaky=leaky),
            out_shape=jax.ShapeDtypeStruct((M, N), out_dtype),
            grid_spec=pltpu.PrefetchScalarGridSpec(
                num_scalar_prefetch=0,
                grid=(grid_m, grid_n),
                in_specs=[
                    pl.BlockSpec((tm, tk), lambda i, j: (i, 0)),
                    pl.BlockSpec((tk, tn), lambda i, j: (0, j)),
                    pl.BlockSpec((1, tn), lambda i, j: (0, j)),
                    pl.BlockSpec((1, tn), lambda i, j: (0, j)),
                ],
                out_specs=pl.BlockSpec((tm, tn), lambda i, j: (i, j)),
            ),
            compiler_params=pltpu.CompilerParams(
                dimension_semantics=("parallel", "parallel"),
                vmem_limit_bytes=vmem),
        )(A, Wm, scale, bias)
    else:
        out = pl.pallas_call(
            functools.partial(_mm_bn_act_multi_k_kernel, leaky=leaky),
            out_shape=jax.ShapeDtypeStruct((M, N), out_dtype),
            grid_spec=pltpu.PrefetchScalarGridSpec(
                num_scalar_prefetch=0,
                grid=(grid_m, grid_n, grid_k),
                in_specs=[
                    pl.BlockSpec((tm, tk), lambda i, j, k: (i, k)),
                    pl.BlockSpec((tk, tn), lambda i, j, k: (k, j)),
                    pl.BlockSpec((1, tn), lambda i, j, k: (0, j)),
                    pl.BlockSpec((1, tn), lambda i, j, k: (0, j)),
                ],
                out_specs=pl.BlockSpec((tm, tn), lambda i, j, k: (i, j)),
                scratch_shapes=[pltpu.VMEM((tm, tn), jnp.float32)],
            ),
            compiler_params=pltpu.CompilerParams(
                dimension_semantics=("parallel", "parallel", "arbitrary"),
                vmem_limit_bytes=vmem),
        )(A, Wm, scale, bias)
    return out


def conv2d_bn_leaky(x, w, scale, bias, *, leaky=True, out_dtype=jnp.bfloat16):
    """x: (B,H,W,Cin) NHWC; w: (KH,KW,Cin,Cout). stride 1, 'same' padding."""
    B, H, W, Cin = x.shape
    KH, KW, _, Cout = w.shape
    x = x.astype(jnp.bfloat16)
    if KH == 1 and KW == 1:
        A = x.reshape(B * H * W, Cin)
    else:
        # TODO(synk): im2col still materializes a KH*KW-inflated bf16 matrix
        # in HBM; a fully fused halo-DMA conv would remove this last blowup.
        pad = (KH - 1) // 2
        xp = jnp.pad(x, ((0, 0), (pad, pad), (pad, pad), (0, 0)))
        cols = [xp[:, i:i + H, j:j + W, :]
                for i in range(KH) for j in range(KW)]
        A = jnp.concatenate(cols, axis=-1).reshape(B * H * W, KH * KW * Cin)
    Wm = w.reshape(KH * KW * Cin, Cout)
    y = _matmul_bn_act(A, Wm, scale, bias, leaky=leaky, out_dtype=out_dtype)
    return y.reshape(B, H, W, Cout)


def maxpool2x2(x):
    """MaxPool2d(2,2) on NHWC via a row-tiled Pallas kernel on a free view."""
    B, H, W, C = x.shape
    Ho, Wo = H // 2, W // 2
    R = B * Ho
    # Free row-major view: (b,h,w,c) -> ((b*Ho+ho), hi, wo, wi*C + c)
    x5 = x.reshape(R, 2, Wo, 2 * C)

    itemsize = x.dtype.itemsize
    lane = max(2 * C, 128)                      # VMEM lane padding of the block
    row_bytes = 2 * Wo * lane * itemsize        # input bytes per output row
    tr = max(1, min(R, (2 * 1024 * 1024) // max(1, row_bytes)))
    if tr >= 8:
        tr = _round_down(tr, 8)
    if R >= 16 and tr > (R + 1) // 2:           # >= 2 blocks for megacore
        tr = max(8, _round_down((R + 1) // 2, 8))

    out = pl.pallas_call(
        functools.partial(_maxpool_kernel, c=C),
        out_shape=jax.ShapeDtypeStruct((R, Wo, C), x.dtype),
        grid_spec=pltpu.PrefetchScalarGridSpec(
            num_scalar_prefetch=0,
            grid=(pl.cdiv(R, tr),),
            in_specs=[pl.BlockSpec((tr, 2, Wo, 2 * C),
                                   lambda r: (r, 0, 0, 0))],
            out_specs=pl.BlockSpec((tr, Wo, C), lambda r: (r, 0, 0)),
        ),
        compiler_params=pltpu.CompilerParams(
            dimension_semantics=("parallel",),
            vmem_limit_bytes=_vmem_limit_bytes()),
    )(x5)
    return out.reshape(B, Ho, Wo, C)


def reorg(x, stride=2):
    """ReorgLayer semantics (NHWC): out[b,hq,wq,(hr*s+wr)*C + c] =
    x[b, hq*s+hr, wq*s+wr, c] -- matches the PyTorch view/transpose chain."""
    parts = [x[:, hr::stride, wr::stride, :]
             for hr in range(stride) for wr in range(stride)]
    return jnp.concatenate(parts, axis=-1)


# ----------------------------------------------------------------------------
# Parameter construction (deterministic, synthetic)
# ----------------------------------------------------------------------------
def _make_conv_params(key, cin, cout, k, *, bn=True):
    kw, kg, kb, km, kv, kcb = jax.random.split(key, 6)
    fan_in = cin * k * k
    w = (jax.random.normal(kw, (k, k, cin, cout), jnp.float32) *
         (1.4 / jnp.sqrt(jnp.float32(fan_in)))).astype(jnp.bfloat16)
    if bn:
        gamma = 1.0 + 0.1 * jax.random.normal(kg, (cout,), jnp.float32)
        beta = 0.1 * jax.random.normal(kb, (cout,), jnp.float32)
        mean = 0.1 * jax.random.normal(km, (cout,), jnp.float32)
        var = 0.5 + jax.random.uniform(kv, (cout,), jnp.float32)
        scale = gamma / jnp.sqrt(var + 1e-5)   # eval-mode BN folding (exact)
        bias = beta - mean * scale
        leaky = True
    else:                                      # plain Conv2d with bias
        scale = jnp.ones((cout,), jnp.float32)
        bias = 0.1 * jax.random.normal(kcb, (cout,), jnp.float32)
        leaky = False
    return {"w": w, "scale": scale, "bias": bias, "leaky": leaky}


def init_yolov2_params(key):
    def conv_list(key, cfgs, bn=True):
        out = []
        for spec in cfgs:
            if spec == "M":
                out.append("M")
            else:
                cin, cout, k = spec
                key, sub = jax.random.split(key)
                out.append(_make_conv_params(sub, cin, cout, k, bn=bn))
        return key, out

    params = {}
    seq1 = (_DARKNET_CFG["layer0"] + _DARKNET_CFG["layer1"] +
            _DARKNET_CFG["layer2"] + _DARKNET_CFG["layer3"] +
            _DARKNET_CFG["layer4"])
    key, params["conv1"] = conv_list(key, seq1)
    key, params["conv2"] = conv_list(key, _DARKNET_CFG["layer5"])
    key, params["conv3"] = conv_list(key, [(1024, 1024, 3), (1024, 1024, 3)])
    key, params["downsampler"] = conv_list(key, [(512, 64, 1)])
    key, c4a = conv_list(key, [(1280, 1024, 3)])
    key, sub = jax.random.split(key)
    c4b = _make_conv_params(sub, 1024, (5 + NUM_CLASSES) * NUM_ANCHORS, 1,
                            bn=False)
    params["conv4"] = c4a + [c4b]
    return params


# ----------------------------------------------------------------------------
# Forward pass
# ----------------------------------------------------------------------------
def _run_seq(x, layers):
    for item in layers:
        if item == "M":
            x = maxpool2x2(x)
        else:
            # intermediate activations bf16; the final (no-BN) detection conv
            # keeps f32 so the head runs at reference precision.
            out_dtype = jnp.bfloat16 if item["leaky"] else jnp.float32
            x = conv2d_bn_leaky(x, item["w"], item["scale"], item["bias"],
                                leaky=item["leaky"], out_dtype=out_dtype)
    return x


def yolov2_forward(params, x_nchw):
    """x_nchw: (B, 3, H, W) with H, W divisible by 32.
    Returns (delta_pred, conf_pred, class_pred) exactly as the PyTorch
    inference branch: shapes (B, h*w*5, 4), (B, h*w*5, 1), (B, h*w*5, C)."""
    x = jnp.transpose(x_nchw, (0, 2, 3, 1)).astype(jnp.float32)  # NCHW -> NHWC

    x = _run_seq(x, params["conv1"])                       # (B, H/16, W/16, 512)
    shortcut = reorg(_run_seq(x, params["downsampler"]))   # (B, H/32, W/32, 256)
    x = _run_seq(x, params["conv2"])                       # (B, H/32, W/32, 1024)
    x = _run_seq(x, params["conv3"])                       # (B, H/32, W/32, 1024)
    x = jnp.concatenate([shortcut, x.astype(shortcut.dtype)], axis=-1)
    out = _run_seq(x, params["conv4"])                     # (B, h, w, 5*(5+C)) f32

    B, h, w, _ = out.shape
    P = h * w * NUM_ANCHORS
    # NHWC output == PyTorch's permute(0,2,3,1); view(B, h*w*A, 5+C)
    out2d = out.reshape(B * P, 5 + NUM_CLASSES)

    head = pl.pallas_call(
        _head_kernel,
        out_shape=jax.ShapeDtypeStruct((B * P, 5 + NUM_CLASSES), jnp.float32),
    )(out2d)

    delta_pred = head[:, 0:4].reshape(B, P, 4)
    conf_pred = head[:, 4:5].reshape(B, P, 1)
    class_pred = head[:, 5:].reshape(B, P, NUM_CLASSES)
    return delta_pred, conf_pred, class_pred


# ----------------------------------------------------------------------------
if __name__ == "__main__":
    root = jax.random.PRNGKey(0)
    k_params, k_x = jax.random.split(root)

    params = init_yolov2_params(k_params)

    # Smallest shape consistent with the module: 3 input channels, spatial
    # divisible by 32 (4 maxpools in conv1 + 1 in conv2) -> 2x2 output grid.
    # NOTE: tile/fusion wins should be benchmarked at 416^2 / B>=4; this is
    # only a correctness smoke test.
    x = jax.random.normal(k_x, (1, 3, 64, 64), jnp.float32)

    delta_pred, conf_pred, class_pred = yolov2_forward(params, x)
    jax.block_until_ready((delta_pred, conf_pred, class_pred))

    assert delta_pred.shape == (1, 2 * 2 * NUM_ANCHORS, 4)
    assert conf_pred.shape == (1, 2 * 2 * NUM_ANCHORS, 1)
    assert class_pred.shape == (1, 2 * 2 * NUM_ANCHORS, NUM_CLASSES)

    print("KERNEL_OK")
</pallas_src>

<mosaic_0001>
module attributes {stable_mosaic.version = 11 : i64} {
  func.func @_mm_bn_act_single_k_kernel(%arg0: i32, %arg1: i32, %arg2: memref<512x27xbf16, #tpu.memory_space<vmem>>, %arg3: memref<27x32xbf16, #tpu.memory_space<vmem>>, %arg4: memref<1x32xf32, #tpu.memory_space<vmem>>, %arg5: memref<1x32xf32, #tpu.memory_space<vmem>>, %arg6: memref<512x32xbf16, #tpu.memory_space<vmem>>) attributes {dimension_semantics = [#tpu.dimension_semantics<parallel>, #tpu.dimension_semantics<parallel>], iteration_bounds = array<i64: 8, 1>, scalar_prefetch = 0 : i64, scratch_operands = 0 : i64, tpu.core_type = #tpu.core_type<tc>, window_params = [{transform_indices = @transform_0, window_bounds = array<i64: 512, 27>}, {transform_indices = @transform_1, window_bounds = array<i64: 27, 32>}, {transform_indices = @transform_2, window_bounds = array<i64: 1, 32>}, {transform_indices = @transform_3, window_bounds = array<i64: 1, 32>}, {transform_indices = @transform_4, window_bounds = array<i64: 512, 32>}]} {
    %c0 = arith.constant 0 : index
    %c0_0 = arith.constant 0 : index
    %0 = vector.load %arg2[%c0, %c0_0] : memref<512x27xbf16, #tpu.memory_space<vmem>>, vector<512x27xbf16>
    %c0_1 = arith.constant 0 : index
    %c0_2 = arith.constant 0 : index
    %1 = vector.load %arg3[%c0_1, %c0_2] : memref<27x32xbf16, #tpu.memory_space<vmem>>, vector<27x32xbf16>
    %cst = arith.constant dense<0.000000e+00> : vector<512x32xf32>
    %2 = tpu.matmul %0, %1, %cst {dimension_numbers = #tpu.dot_dimension_numbers<[1], [0], [0], [1], [0, 0, 1, 1], [], []>} : vector<512x27xbf16>, vector<27x32xbf16>, vector<512x32xf32> -> vector<512x32xf32>
    %c0_3 = arith.constant 0 : index
    %c0_4 = arith.constant 0 : index
    %3 = vector.load %arg4[%c0_3, %c0_4] : memref<1x32xf32, #tpu.memory_space<vmem>>, vector<1x32xf32>
    %4 = vector.broadcast %3 : vector<1x32xf32> to vector<512x32xf32>
    %5 = arith.mulf %2, %4 : vector<512x32xf32>
    %c0_5 = arith.constant 0 : index
    %c0_6 = arith.constant 0 : index
    %6 = vector.load %arg5[%c0_5, %c0_6] : memref<1x32xf32, #tpu.memory_space<vmem>>, vector<1x32xf32>
    %7 = vector.broadcast %6 : vector<1x32xf32> to vector<512x32xf32>
    %8 = arith.addf %5, %7 : vector<512x32xf32>
    %cst_7 = arith.constant 0.000000e+00 : f32
    %9 = vector.broadcast %cst_7 : f32 to vector<512x32xf32>
    %10 = arith.cmpf ogt, %8, %9 : vector<512x32xf32>
    %cst_8 = arith.constant 1.000000e-01 : f32
    %11 = vector.broadcast %cst_8 : f32 to vector<512x32xf32>
    %12 = arith.mulf %11, %8 : vector<512x32xf32>
    %13 = arith.select %10, %8, %12 : vector<512x32xi1>, vector<512x32xf32>
    %14 = arith.truncf %13 : vector<512x32xf32> to vector<512x32xbf16>
    %c0_9 = arith.constant 0 : index
    %c0_10 = arith.constant 0 : index
    %15 = vector.load %arg6[%c0_9, %c0_10] : memref<512x32xbf16, #tpu.memory_space<vmem>>, vector<512x32xbf16>
    tpu.vector_store %arg6[%c0_9, %c0_10], %14 {strides = array<i32>} : memref<512x32xbf16, #tpu.memory_space<vmem>>, vector<512x32xbf16>,
    return
  }
  func.func @transform_0(%arg0: i32, %arg1: i32) -> (i32, i32) {
    %c0_i32 = arith.constant 0 : i32
    %c0_i32_0 = arith.constant 0 : i32
    return %arg0, %c0_i32 : i32, i32
  }
  func.func @transform_1(%arg0: i32, %arg1: i32) -> (i32, i32) {
    %c0_i32 = arith.constant 0 : i32
    %c0_i32_0 = arith.constant 0 : i32
    return %c0_i32, %arg1 : i32, i32
  }
  func.func @transform_2(%arg0: i32, %arg1: i32) -> (i32, i32) {
    %c0_i32 = arith.constant 0 : i32
    %c0_i32_0 = arith.constant 0 : i32
    return %c0_i32, %arg1 : i32, i32
  }
  func.func @transform_3(%arg0: i32, %arg1: i32) -> (i32, i32) {
    %c0_i32 = arith.constant 0 : i32
    %c0_i32_0 = arith.constant 0 : i32
    return %c0_i32, %arg1 : i32, i32
  }
  func.func @transform_4(%arg0: i32, %arg1: i32) -> (i32, i32) {
    %c0_i32 = arith.constant 0 : i32
    return %arg0, %arg1 : i32, i32
  }
}

</mosaic_0001>

<llo_original>
// kernel: tpu_custom_call.1
$region0: #{tpu_custom_call.1}
  #allocation0 [shape = 'u32[]', space=smem, size = 0x4, offset = 0x4, fixed_abs, tag = 'smem constant byte address 0x4 - core index']
  #allocation1 [shape = 'u32[72,128]{1,0:T(1,128)}', space=vmem, size = 0x9000, scoped, tag = 'internal scratch']
  %s0 = inlined_call_operand.vmem [shape: bf16[4096,27], index: 0, kind: input, shape index: {}]
  %s1 = inlined_call_operand.vmem [shape: bf16[27,32], index: 1, kind: input, shape index: {}]
  %s2 = inlined_call_operand.vmem [shape: f32[1,32], index: 2, kind: input, shape index: {}]
  %s3 = inlined_call_operand.vmem [shape: f32[1,32], index: 3, kind: input, shape index: {}]
  %s4 = inlined_call_operand.vmem [shape: bf16[4096,32], index: 4, kind: output, shape index: {}]
  %s5 = sld [smem:[#allocation0]]
  $region49: #{tpu_custom_call.1} parent=0
    _
  %s7 = ssub.s32 1, %s5
  %s8 = scalar_select 0, %s7, %s5
  loop: start=0, step=1, limit=10
  $region2: #{tpu_custom_call.1} parent=0 // loop_pre_header
    _
  $region3: #{tpu_custom_call.1} parent=0 // loop_header
    %s10 = sphi 0, %s14
    %p11 = scmp.ge.s32.totalorder %s10, 10
    %s17 = sphi 0, %s29
    %s18 = sphi 0, %s25
    %s19 = sphi 0, %s17
    %s20 = sphi 0, %s18
    %s21 = sphi 0, %s19
    %s22 = sphi 0, %s20
    %s32 = sphi 0, %s34
    %s35 = sphi 0, %s32
    %s36 = sphi 0, %s35
    %s52 = sphi 0, %s36
    %s58 = sphi 0, %s60
    %s61 = sphi 0, %s58
    %s62 = sphi 0, %s61
    %s78 = sphi 0, %s62
    %s84 = sphi 0, %s86
    %s87 = sphi 0, %s84
    %s88 = sphi 0, %s87
    %s104 = sphi 0, %s88
    %s110 = sphi 0, %s112
    %s113 = sphi 0, %s110
    %s114 = sphi 0, %s113
    %s130 = sphi 0, %s114
    %s138 = sphi 0, %s140
    %s141 = sphi 0, %s138
    %s142 = sphi 0, %s141
    %s158 = sphi 0, %s142
  $region4: #{tpu_custom_call.1} parent=0 // loop_header_branch
    %13 = sbr.rel (%p11) target = $region8
  $region5: #{tpu_custom_call.1} parent=0 // loop_body
    %s15 = ssub.s32 %s10, 1
    %s16 = ssub.s32 %s10, 2
    %s23 = sadd.s32 1, %s18
    %p24 = scmp.ge.s32.totalorder %s23, 1
    %s25 = scalar_select %p24, 0, %s23
    %s26 = sadd.s32 1, %s17
    %s27 = scalar_select %p24, %s26, %s17
    %p28 = scmp.ge.s32.totalorder %s27, 8
    %s29 = scalar_select %p28, 0, %s27
    %s30 = ssub.s32 %s17, %s29
    %p31 = scmp.eq.s32.totalorder %s30, 0
    %s33 = sadd.s32 %s32, 1
    %s34 = scalar_select %p31, %s32, %s33
    %p37 = pneg %p31
    %p38 = scmp.eq.s32.totalorder %s10, 7
    %p39 = por %p37, %p38
    %p40 = scmp.ne.s32.totalorder %s32, %s35
    %p41 = scmp.eq.s32.totalorder %s10, 0
    %p42 = por %p40, %p41
    %p43 = scmp.ne.s32.totalorder %s32, %s35
    %p44 = scmp.eq.s32.totalorder %s15, 7
    %p45 = por %p43, %p44
    %p46 = scmp.ne.s32.totalorder %s35, %s36
    %p47 = scmp.eq.s32.totalorder %s15, 0
    %p48 = por %p46, %p47
    %p49 = scmp.ne.s32.totalorder %s35, %s36
    %p50 = scmp.eq.s32.totalorder %s16, 7
    %p51 = por %p49, %p50
    %p53 = scmp.ne.s32.totalorder %s36, %s52
    %p54 = scmp.eq.s32.totalorder %s16, 0
    %p55 = por %p53, %p54
    %s56 = ssub.s32 %s18, %s25
    %p57 = scmp.eq.s32.totalorder %s56, 0
    %s59 = sadd.s32 %s58, 1
    %s60 = scalar_select %p57, %s58, %s59
    %p63 = pneg %p57
    %p64 = scmp.eq.s32.totalorder %s10, 7
    %p65 = por %p63, %p64
    %p66 = scmp.ne.s32.totalorder %s58, %s61
    %p67 = scmp.eq.s32.totalorder %s10, 0
    %p68 = por %p66, %p67
    %p69 = scmp.ne.s32.totalorder %s58, %s61
    %p70 = scmp.eq.s32.totalorder %s15, 7
    %p71 = por %p69, %p70
    %p72 = scmp.ne.s32.totalorder %s61, %s62
    %p73 = scmp.eq.s32.totalorder %s15, 0
    %p74 = por %p72, %p73
    %p75 = scmp.ne.s32.totalorder %s61, %s62
    %p76 = scmp.eq.s32.totalorder %s16, 7
    %p77 = por %p75, %p76
    %p79 = scmp.ne.s32.totalorder %s62, %s78
    %p80 = scmp.eq.s32.totalorder %s16, 0
    %p81 = por %p79, %p80
    %s82 = ssub.s32 %s18, %s25
    %p83 = scmp.eq.s32.totalorder %s82, 0
    %s85 = sadd.s32 %s84, 1
    %s86 = scalar_select %p83, %s84, %s85
    %p89 = pneg %p83
    %p90 = scmp.eq.s32.totalorder %s10, 7
    %p91 = por %p89, %p90
    %p92 = scmp.ne.s32.totalorder %s84, %s87
    %p93 = scmp.eq.s32.totalorder %s10, 0
    %p94 = por %p92, %p93
    %p95 = scmp.ne.s32.totalorder %s84, %s87
    %p96 = scmp.eq.s32.totalorder %s15, 7
    %p97 = por %p95, %p96
    %p98 = scmp.ne.s32.totalorder %s87, %s88
    %p99 = scmp.eq.s32.totalorder %s15, 0
    %p100 = por %p98, %p99
    %p101 = scmp.ne.s32.totalorder %s87, %s88
    %p102 = scmp.eq.s32.totalorder %s16, 7
    %p103 = por %p101, %p102
    %p105 = scmp.ne.s32.totalorder %s88, %s104
    %p106 = scmp.eq.s32.totalorder %s16, 0
    %p107 = por %p105, %p106
    %s108 = ssub.s32 %s18, %s25
    %p109 = scmp.eq.s32.totalorder %s108, 0
    %s111 = sadd.s32 %s110, 1
    %s112 = scalar_select %p109, %s110, %s111
    %p115 = pneg %p109
    %p116 = scmp.eq.s32.totalorder %s10, 7
    %p117 = por %p115, %p116
    %p118 = scmp.ne.s32.totalorder %s110, %s113
    %p119 = scmp.eq.s32.totalorder %s10, 0
    %p120 = por %p118, %p119
    %p121 = scmp.ne.s32.totalorder %s110, %s113
    %p122 = scmp.eq.s32.totalorder %s15, 7
    %p123 = por %p121, %p122
    %p124 = scmp.ne.s32.totalorder %s113, %s114
    %p125 = scmp.eq.s32.totalorder %s15, 0
    %p126 = por %p124, %p125
    %p127 = scmp.ne.s32.totalorder %s113, %s114
    %p128 = scmp.eq.s32.totalorder %s16, 7
    %p129 = por %p127, %p128
    %p131 = scmp.ne.s32.totalorder %s114, %s130
    %p132 = scmp.eq.s32.totalorder %s16, 0
    %p133 = por %p131, %p132
    %s134 = ssub.s32 %s17, %s29
    %s135 = ssub.s32 %s18, %s25
    %s136 = sor.u32 %s134, %s135
    %p137 = scmp.eq.s32.totalorder %s136, 0
    %s139 = sadd.s32 %s138, 1
    %s140 = scalar_select %p137, %s138, %s139
    %p143 = pneg %p137
    %p144 = scmp.eq.s32.totalorder %s10, 7
    %p145 = por %p143, %p144
    %p146 = scmp.ne.s32.totalorder %s138, %s141
    %p147 = scmp.eq.s32.totalorder %s10, 0
    %p148 = por %p146, %p147
    %p149 = scmp.ne.s32.totalorder %s138, %s141
    %p150 = scmp.eq.s32.totalorder %s15, 7
    %p151 = por %p149, %p150
    %p152 = scmp.ne.s32.totalorder %s141, %s142
    %p153 = scmp.eq.s32.totalorder %s15, 0
    %p154 = por %p152, %p153
    %p155 = scmp.ne.s32.totalorder %s141, %s142
    %p156 = scmp.eq.s32.totalorder %s16, 7
    %p157 = por %p155, %p156
    %p159 = scmp.ne.s32.totalorder %s142, %s158
    %p160 = scmp.eq.s32.totalorder %s16, 0
    %p161 = por %p159, %p160
    %p162 = scmp.le.s32.totalorder 1, %s10
    %p163 = scmp.lt.s32.totalorder %s10, 9
    %p164 = pnand %p162, %p163
    %p165 = pneg %p164
    // Predicated region
    $region9: #{tpu_custom_call.1} parent=5 // pred_check
      _
    $region10: #{tpu_custom_call.1} parent=5 // pred_check_branch
      %167 = sbr.rel (%p164) target = $region12
    $region11: #{tpu_custom_call.1} parent=5 // pred_region
      %s168 = ssub.s32 %s10, 1
      // Predicated region
      $region13: #{tpu_custom_call.1} parent=11 // pred_check
        %p169 = pneg %p74
      $region14: #{tpu_custom_call.1} parent=11 // pred_check_branch
        %171 = sbr.rel (%p169) target = $region16
      $region15: #{tpu_custom_call.1} parent=11 // pred_region
        %p172 = scmp.lt.s32.totalorder %s20, 0
        %s173 = scalar_select %p172, %s20, 0
        %s174 = smul.addr %s173, 4
        %s175 = scalar_lea.vmem %s1, %s174
      $region16: #{tpu_custom_call.1} parent=11 // pred_fallthru
        _
      // Predicated region
      $region17: #{tpu_custom_call.1} parent=11 // pred_check
        %p176 = pneg %p100
      $region18: #{tpu_custom_call.1} parent=11 // pred_check_branch
        %178 = sbr.rel (%p176) target = $region20
      $region19: #{tpu_custom_call.1} parent=11 // pred_region
        %p179 = scmp.lt.s32.totalorder %s20, 0
        %s180 = scalar_select %p179, %s20, 0
        %s181 = scalar_lea.vmem %s2, %s180
      $region20: #{tpu_custom_call.1} parent=11 // pred_fallthru
        _
      // Predicated region
      $region21: #{tpu_custom_call.1} parent=11 // pred_check
        %p182 = pneg %p126
      $region22: #{tpu_custom_call.1} parent=11 // pred_check_branch
        %184 = sbr.rel (%p182) target = $region24
      $region23: #{tpu_custom_call.1} parent=11 // pred_region
        %p185 = scmp.lt.s32.totalorder %s20, 0
        %s186 = scalar_select %p185, %s20, 0
        %s187 = scalar_lea.vmem %s3, %s186
      $region24: #{tpu_custom_call.1} parent=11 // pred_fallthru
        _
    $region12: #{tpu_custom_call.1} parent=5 // pred_fallthru
      _
    %p188 = scmp.lt.s32.totalorder %s10, 8
    // Predicated region
    $region25: #{tpu_custom_call.1} parent=5 // pred_check
      %p189 = pneg %p188
    $region26: #{tpu_custom_call.1} parent=5 // pred_check_branch
      %191 = sbr.rel (%p189) target = $region28
    $region27: #{tpu_custom_call.1} parent=5 // pred_region
      // Predicated region
      $region29: #{tpu_custom_call.1} parent=27 // pred_check
        %p192 = pneg %p42
      $region30: #{tpu_custom_call.1} parent=27 // pred_check_branch
        %194 = sbr.rel (%p192) target = $region32
      $region31: #{tpu_custom_call.1} parent=27 // pred_region
        %s195 = smul.u32 64, %s17
        %p196 = scmp.lt.s32.totalorder %s195, 511
        %s197 = scalar_select %p196, %s195, 511
        %s198 = smul.addr %s197, 4
        %s199 = scalar_lea.vmem %s0, %s198
        %s200 = smul.u32 64, %s17
      $region32: #{tpu_custom_call.1} parent=27 // pred_fallthru
        _
    $region28: #{tpu_custom_call.1} parent=5 // pred_fallthru
      _
    %p201 = scmp.le.s32.totalorder 1, %s10
    %p202 = scmp.lt.s32.totalorder %s10, 9
    %p203 = pnand %p201, %p202
    %p204 = pneg %p203
    // Predicated region
    $region33: #{tpu_custom_call.1} parent=5 // pred_check
      _
    $region34: #{tpu_custom_call.1} parent=5 // pred_check_branch
      %206 = sbr.rel (%p203) target = $region36
    $region35: #{tpu_custom_call.1} parent=5 // pred_region
      %s207 = ssub.s32 %s10, 1
      %s208 = smul.u32 64, %s19
      %p209 = scmp.lt.s32.totalorder %s208, 511
      %s210 = scalar_select %p209, %s208, 511
      %s211 = smul.addr %s210, 4
      %s212 = scalar_lea.vmem %s0, %s211
      %p213 = pneg %p48
      %p214 = pneg %p45
      %p215 = scmp.lt.s32.totalorder %s20, 0
      %s216 = scalar_select %p215, %s20, 0
      %s217 = smul.addr %s216, 4
      %s218 = scalar_lea.vmem %s1, %s217
      %p219 = pneg %p74
      %p220 = pneg %p71
      %p221 = scmp.lt.s32.totalorder %s20, 0
      %s222 = scalar_select %p221, %s20, 0
      %s223 = scalar_lea.vmem %s2, %s222
      %p224 = pneg %p100
      %p225 = pneg %p97
      %p226 = scmp.lt.s32.totalorder %s20, 0
      %s227 = scalar_select %p226, %s20, 0
      %s228 = scalar_lea.vmem %s3, %s227
      %p229 = pneg %p126
      %p230 = pneg %p123
      %p231 = pneg %p154
      %p232 = pneg %p151
      %s233 = smul.u32 64, %s19
      %p234 = scmp.lt.s32.totalorder %s233, 511
      %s235 = scalar_select %p234, %s233, 511
      %p236 = scmp.lt.s32.totalorder %s20, 0
      %s237 = scalar_select %p236, %s20, 0
      %s238 = sadd.s32 %s237, %s235
      %s239 = smul.addr %s238, 4
      %s240 = scalar_lea.vmem %s4, %s239
      %s241 = smul.u32 64, %s19
      %p242 = scmp.lt.s32.totalorder %s241, 511
      %s243 = scalar_select %p242, %s241, 511
      %s244 = smul.addr %s243, 4
      %s245 = scalar_lea.vmem %s0, %s244
      %s246 = smul.u32 64, %s19
      %p247 = scmp.lt.s32.totalorder %s20, 0
      %s248 = scalar_select %p247, %s20, 0
      %s249 = smul.addr %s248, 4
      %s250 = scalar_lea.vmem %s1, %s249
      %p251 = scmp.lt.s32.totalorder %s20, 0
      %s252 = scalar_select %p251, %s20, 0
      %s253 = scalar_lea.vmem %s2, %s252
      %p254 = scmp.lt.s32.totalorder %s20, 0
      %s255 = scalar_select %p254, %s20, 0
      %s256 = scalar_lea.vmem %s3, %s255
      %s257 = smul.u32 64, %s19
      %p258 = scmp.lt.s32.totalorder %s257, 511
      %s259 = scalar_select %p258, %s257, 511
      %p260 = scmp.lt.s32.totalorder %s20, 0
      %s261 = scalar_select %p260, %s20, 0
      %s262 = sadd.s32 %s261, %s259
      %s263 = smul.addr %s262, 4
      %s264 = scalar_lea.vmem %s4, %s263
      %s265 = smul.u32 64, %s19
      %v267 = vld [vmem:[%s245] sm:$0xf]
      %v268 = vld [vmem:[%s245 + $0x4] sm:$0xf]
      %v269 = vld [vmem:[%s245 + $0x8] sm:$0xf]
      %v270 = vld [vmem:[%s245 + $0xc] sm:$0xf]
      %v271 = vld [vmem:[%s245 + $0x10] sm:$0xf]
      %v272 = vld [vmem:[%s245 + $0x14] sm:$0xf]
      %v273 = vld [vmem:[%s245 + $0x18] sm:$0xf]
      %v274 = vld [vmem:[%s245 + $0x1c] sm:$0xf]
      %v275 = vld [vmem:[%s245 + $0x20] sm:$0xf]
      %v276 = vld [vmem:[%s245 + $0x24] sm:$0xf]
      %v277 = vld [vmem:[%s245 + $0x28] sm:$0xf]
      %v278 = vld [vmem:[%s245 + $0x2c] sm:$0xf]
      %v279 = vld [vmem:[%s245 + $0x30] sm:$0xf]
      %v280 = vld [vmem:[%s245 + $0x34] sm:$0xf]
      %v281 = vld [vmem:[%s245 + $0x38] sm:$0xf]
      %v282 = vld [vmem:[%s245 + $0x3c] sm:$0xf]
      %v283 = vld [vmem:[%s245 + $0x40] sm:$0xf]
      %v284 = vld [vmem:[%s245 + $0x44] sm:$0xf]
      %v285 = vld [vmem:[%s245 + $0x48] sm:$0xf]
      %v286 = vld [vmem:[%s245 + $0x4c] sm:$0xf]
      %v287 = vld [vmem:[%s245 + $0x50] sm:$0xf]
      %v288 = vld [vmem:[%s245 + $0x54] sm:$0xf]
      %v289 = vld [vmem:[%s245 + $0x58] sm:$0xf]
      %v290 = vld [vmem:[%s245 + $0x5c] sm:$0xf]
      %v291 = vld [vmem:[%s245 + $0x60] sm:$0xf]
      %v292 = vld [vmem:[%s245 + $0x64] sm:$0xf]
      %v293 = vld [vmem:[%s245 + $0x68] sm:$0xf]
      %v294 = vld [vmem:[%s245 + $0x6c] sm:$0xf]
      %v295 = vld [vmem:[%s245 + $0x70] sm:$0xf]
      %v296 = vld [vmem:[%s245 + $0x74] sm:$0xf]
      %v297 = vld [vmem:[%s245 + $0x78] sm:$0xf]
      %v298 = vld [vmem:[%s245 + $0x7c] sm:$0xf]
      %v299 = vld [vmem:[%s245 + $0x80] sm:$0xf]
      %v300 = vld [vmem:[%s245 + $0x84] sm:$0xf]
      %v301 = vld [vmem:[%s245 + $0x88] sm:$0xf]
      %v302 = vld [vmem:[%s245 + $0x8c] sm:$0xf]
      %v303 = vld [vmem:[%s245 + $0x90] sm:$0xf]
      %v304 = vld [vmem:[%s245 + $0x94] sm:$0xf]
      %v305 = vld [vmem:[%s245 + $0x98] sm:$0xf]
      %v306 = vld [vmem:[%s245 + $0x9c] sm:$0xf]
      %v307 = vld [vmem:[%s245 + $0xa0] sm:$0xf]
      %v308 = vld [vmem:[%s245 + $0xa4] sm:$0xf]
      %v309 = vld [vmem:[%s245 + $0xa8] sm:$0xf]
      %v310 = vld [vmem:[%s245 + $0xac] sm:$0xf]
      %v311 = vld [vmem:[%s245 + $0xb0] sm:$0xf]
      %v312 = vld [vmem:[%s245 + $0xb4] sm:$0xf]
      %v313 = vld [vmem:[%s245 + $0xb8] sm:$0xf]
      %v314 = vld [vmem:[%s245 + $0xbc] sm:$0xf]
      %v315 = vld [vmem:[%s245 + $0xc0] sm:$0xf]
      %v316 = vld [vmem:[%s245 + $0xc4] sm:$0xf]
      %v317 = vld [vmem:[%s245 + $0xc8] sm:$0xf]
      %v318 = vld [vmem:[%s245 + $0xcc] sm:$0xf]
      %v319 = vld [vmem:[%s245 + $0xd0] sm:$0xf]
      %v320 = vld [vmem:[%s245 + $0xd4] sm:$0xf]
      %v321 = vld [vmem:[%s245 + $0xd8] sm:$0xf]
      %v322 = vld [vmem:[%s245 + $0xdc] sm:$0xf]
      %v323 = vld [vmem:[%s245 + $0xe0] sm:$0xf]
      %v324 = vld [vmem:[%s245 + $0xe4] sm:$0xf]
      %v325 = vld [vmem:[%s245 + $0xe8] sm:$0xf]
      %v326 = vld [vmem:[%s245 + $0xec] sm:$0xf]
      %v327 = vld [vmem:[%s245 + $0xf0] sm:$0xf]
      %v328 = vld [vmem:[%s245 + $0xf4] sm:$0xf]
      %v329 = vld [vmem:[%s245 + $0xf8] sm:$0xf]
      %v330 = vld [vmem:[%s245 + $0xfc] sm:$0xf]
      %v331 = vld [vmem:[%s250] sm:$0xf]
      %v332 = vld [vmem:[%s250 + $0x4] sm:$0xf]
      %v333 = vld [vmem:[%s250 + $0x8] sm:$0xf]
      %v334 = vld [vmem:[%s250 + $0xc] sm:$0x3]
      %v399 = vunpack.c.l.b16 %v267
      %v400 = vunpack.c.l.b16 %v268
      %v401 = vunpack.c.l.b16 %v269
      %v402 = vunpack.c.l.b16 %v270
      %v403 = vunpack.c.l.b16 %v271
      %v404 = vunpack.c.l.b16 %v272
      %v405 = vunpack.c.l.b16 %v273
      %v406 = vunpack.c.l.b16 %v274
      %v407 = vunpack.c.l.b16 %v275
      %v408 = vunpack.c.l.b16 %v276
      %v409 = vunpack.c.l.b16 %v277
      %v410 = vunpack.c.l.b16 %v278
      %v411 = vunpack.c.l.b16 %v279
      %v412 = vunpack.c.l.b16 %v280
      %v413 = vunpack.c.l.b16 %v281
      %v414 = vunpack.c.l.b16 %v282
      %v415 = vunpack.c.l.b16 %v283
      %v416 = vunpack.c.l.b16 %v284
      %v417 = vunpack.c.l.b16 %v285
      %v418 = vunpack.c.l.b16 %v286
      %v419 = vunpack.c.l.b16 %v287
      %v420 = vunpack.c.l.b16 %v288
      %v421 = vunpack.c.l.b16 %v289
      %v422 = vunpack.c.l.b16 %v290
      %v423 = vunpack.c.l.b16 %v291
      %v424 = vunpack.c.l.b16 %v292
      %v425 = vunpack.c.l.b16 %v293
      %v426 = vunpack.c.l.b16 %v294
      %v427 = vunpack.c.l.b16 %v295
      %v428 = vunpack.c.l.b16 %v296
      %v429 = vunpack.c.l.b16 %v297
      %v430 = vunpack.c.l.b16 %v298
      %v431 = vunpack.c.l.b16 %v299
      %v432 = vunpack.c.l.b16 %v300
      %v433 = vunpack.c.l.b16 %v301
      %v434 = vunpack.c.l.b16 %v302
      %v435 = vunpack.c.l.b16 %v303
      %v436 = vunpack.c.l.b16 %v304
      %v437 = vunpack.c.l.b16 %v305
      %v438 = vunpack.c.l.b16 %v306
      %v439 = vunpack.c.l.b16 %v307
      %v440 = vunpack.c.l.b16 %v308
      %v441 = vunpack.c.l.b16 %v309
      %v442 = vunpack.c.l.b16 %v310
      %v443 = vunpack.c.l.b16 %v311
      %v444 = vunpack.c.l.b16 %v312
      %v445 = vunpack.c.l.b16 %v313
      %v446 = vunpack.c.l.b16 %v314
      %v447 = vunpack.c.l.b16 %v315
      %v448 = vunpack.c.l.b16 %v316
      %v449 = vunpack.c.l.b16 %v317
      %v450 = vunpack.c.l.b16 %v318
      %v451 = vunpack.c.l.b16 %v319
      %v452 = vunpack.c.l.b16 %v320
      %v453 = vunpack.c.l.b16 %v321
      %v454 = vunpack.c.l.b16 %v322
      %v455 = vunpack.c.l.b16 %v323
      %v456 = vunpack.c.l.b16 %v324
      %v457 = vunpack.c.l.b16 %v325
      %v458 = vunpack.c.l.b16 %v326
      %v459 = vunpack.c.l.b16 %v327
      %v460 = vunpack.c.l.b16 %v328
      %v461 = vunpack.c.l.b16 %v329
      %v462 = vunpack.c.l.b16 %v330
      %v463 = vpack.c.b16 %v400, %v399
      %v464 = vpack.c.b16 %v402, %v401
      %v465 = vpack.c.b16 %v404, %v403
      %v466 = vpack.c.b16 %v406, %v405
      %v467 = vpack.c.b16 %v408, %v407
      %v468 = vpack.c.b16 %v410, %v409
      %v469 = vpack.c.b16 %v412, %v411
      %v470 = vpack.c.b16 %v414, %v413
      %v471 = vpack.c.b16 %v416, %v415
      %v472 = vpack.c.b16 %v418, %v417
      %v473 = vpack.c.b16 %v420, %v419
      %v474 = vpack.c.b16 %v422, %v421
      %v475 = vpack.c.b16 %v424, %v423
      %v476 = vpack.c.b16 %v426, %v425
      %v477 = vpack.c.b16 %v428, %v427
      %v478 = vpack.c.b16 %v430, %v429
      %v479 = vpack.c.b16 %v432, %v431
      %v480 = vpack.c.b16 %v434, %v433
      %v481 = vpack.c.b16 %v436, %v435
      %v482 = vpack.c.b16 %v438, %v437
      %v483 = vpack.c.b16 %v440, %v439
      %v484 = vpack.c.b16 %v442, %v441
      %v485 = vpack.c.b16 %v444, %v443
      %v486 = vpack.c.b16 %v446, %v445
      %v487 = vpack.c.b16 %v448, %v447
      %v488 = vpack.c.b16 %v450, %v449
      %v489 = vpack.c.b16 %v452, %v451
      %v490 = vpack.c.b16 %v454, %v453
      %v491 = vpack.c.b16 %v456, %v455
      %v492 = vpack.c.b16 %v458, %v457
      %v493 = vpack.c.b16 %v460, %v459
      %v494 = vpack.c.b16 %v462, %v461
      %v499 = vunpack.c.l.b16 %v331
      %v500 = vunpack.c.l.b16 %v332
      %v501 = vunpack.c.l.b16 %v333
      %v502 = vunpack.c.l.b16 %v334
      %v503 = vpack.c.b16 %v500, %v499
      %v504 = vpack.c.b16 %v502, %v501
      %vm506 = vcmask 220160
      %v508 = vsel %vm506, %v463, 0
      %v511 = vsel %vm506, %v464, 0
      %v514 = vsel %vm506, %v465, 0
      %v517 = vsel %vm506, %v466, 0
      %v520 = vsel %vm506, %v467, 0
      %v523 = vsel %vm506, %v468, 0
      %v526 = vsel %vm506, %v469, 0
      %v529 = vsel %vm506, %v470, 0
      %v532 = vsel %vm506, %v471, 0
      %v535 = vsel %vm506, %v472, 0
      %v538 = vsel %vm506, %v473, 0
      %v541 = vsel %vm506, %v474, 0
      %v544 = vsel %vm506, %v475, 0
      %v547 = vsel %vm506, %v476, 0
      %v550 = vsel %vm506, %v477, 0
      %v553 = vsel %vm506, %v478, 0
      %v556 = vsel %vm506, %v479, 0
      %v559 = vsel %vm506, %v480, 0
      %v562 = vsel %vm506, %v481, 0
      %v565 = vsel %vm506, %v482, 0
      %v568 = vsel %vm506, %v483, 0
      %v571 = vsel %vm506, %v484, 0
      %v574 = vsel %vm506, %v485, 0
      %v577 = vsel %vm506, %v486, 0
      %v580 = vsel %vm506, %v487, 0
      %v583 = vsel %vm506, %v488, 0
      %v586 = vsel %vm506, %v489, 0
      %v589 = vsel %vm506, %v490, 0
      %v592 = vsel %vm506, %v491, 0
      %v595 = vsel %vm506, %v492, 0
      %v598 = vsel %vm506, %v493, 0
      %v601 = vsel %vm506, %v494, 0
      %vm603 = vcmask 1044480
      %vm604 = vcmask 1045504
      %v605 = vsel %vm603, 4294967295, 65535
      %v606 = vsel %vm604, %v605, 0
      %v608 = vand.u32 %v504, %v606
      %610 = vmatpush.bf16.msra.mxu0 0
      %611 = vmatpush.bf16.msra.mxu0 0
      %612 = vmatpush.bf16.msra.mxu0 0
      %613 = vmatpush.bf16.msra.mxu0 0
      %614 = vmatpush.bf16.msra.mxu0 0
      %615 = vmatpush.bf16.msra.mxu0 0
      %616 = vmatpush.bf16.msra.mxu0 %v608
      %617 = vmatpush.bf16.msra.mxu0 %v503
      %618 = vmatmul.bf16.gmra.mxu0 %v508
      %v619 = vpop.f32.mrf.mxu0
      %v620 = vadd.f32 0.0, %v619
      %v621 = vpop.f32.mrf.mxu0
      %v622 = vadd.f32 0.0, %v621
      %623 = vmatmul.bf16.gmra.mxu0 %v511
      %v624 = vpop.f32.mrf.mxu0
      %v625 = vadd.f32 0.0, %v624
      %v626 = vpop.f32.mrf.mxu0
      %v627 = vadd.f32 0.0, %v626
      %628 = vmatmul.bf16.gmra.mxu0 %v514
      %v629 = vpop.f32.mrf.mxu0
      %v630 = vadd.f32 0.0, %v629
      %v631 = vpop.f32.mrf.mxu0
      %v632 = vadd.f32 0.0, %v631
      %633 = vmatmul.bf16.gmra.mxu0 %v517
      %v634 = vpop.f32.mrf.mxu0
      %v635 = vadd.f32 0.0, %v634
      %v636 = vpop.f32.mrf.mxu0
      %v637 = vadd.f32 0.0, %v636
      %638 = vmatmul.bf16.gmra.mxu0 %v520
      %v639 = vpop.f32.mrf.mxu0
      %v640 = vadd.f32 0.0, %v639
      %v641 = vpop.f32.mrf.mxu0
      %v642 = vadd.f32 0.0, %v641
      %643 = vmatmul.bf16.gmra.mxu0 %v523
      %v644 = vpop.f32.mrf.mxu0
      %v645 = vadd.f32 0.0, %v644
      %v646 = vpop.f32.mrf.mxu0
      %v647 = vadd.f32 0.0, %v646
      %648 = vmatmul.bf16.gmra.mxu0 %v526
      %v649 = vpop.f32.mrf.mxu0
      %v650 = vadd.f32 0.0, %v649
      %v651 = vpop.f32.mrf.mxu0
      %v652 = vadd.f32 0.0, %v651
      %653 = vmatmul.bf16.gmra.mxu0 %v529
      %v654 = vpop.f32.mrf.mxu0
      %v655 = vadd.f32 0.0, %v654
      %v656 = vpop.f32.mrf.mxu0
      %v657 = vadd.f32 0.0, %v656
      %658 = vmatmul.bf16.gmra.mxu0 %v532
      %v659 = vpop.f32.mrf.mxu0
      %v660 = vadd.f32 0.0, %v659
      %v661 = vpop.f32.mrf.mxu0
      %v662 = vadd.f32 0.0, %v661
      %663 = vmatmul.bf16.gmra.mxu0 %v535
      %v664 = vpop.f32.mrf.mxu0
      %v665 = vadd.f32 0.0, %v664
      %v666 = vpop.f32.mrf.mxu0
      %v667 = vadd.f32 0.0, %v666
      %668 = vmatmul.bf16.gmra.mxu0 %v538
      %v669 = vpop.f32.mrf.mxu0
      %v670 = vadd.f32 0.0, %v669
      %v671 = vpop.f32.mrf.mxu0
      %v672 = vadd.f32 0.0, %v671
      %673 = vmatmul.bf16.gmra.mxu0 %v541
      %v674 = vpop.f32.mrf.mxu0
      %v675 = vadd.f32 0.0, %v674
      %v676 = vpop.f32.mrf.mxu0
      %v677 = vadd.f32 0.0, %v676
      %678 = vmatmul.bf16.gmra.mxu0 %v544
      %v679 = vpop.f32.mrf.mxu0
      %v680 = vadd.f32 0.0, %v679
      %v681 = vpop.f32.mrf.mxu0
      %v682 = vadd.f32 0.0, %v681
      %683 = vmatmul.bf16.gmra.mxu0 %v547
      %v684 = vpop.f32.mrf.mxu0
      %v685 = vadd.f32 0.0, %v684
      %v686 = vpop.f32.mrf.mxu0
      %v687 = vadd.f32 0.0, %v686
      %688 = vmatmul.bf16.gmra.mxu0 %v550
      %v689 = vpop.f32.mrf.mxu0
      %v690 = vadd.f32 0.0, %v689
      %v691 = vpop.f32.mrf.mxu0
      %v692 = vadd.f32 0.0, %v691
      %693 = vmatmul.bf16.gmra.mxu0 %v553
      %v694 = vpop.f32.mrf.mxu0
      %v695 = vadd.f32 0.0, %v694
      %v696 = vpop.f32.mrf.mxu0
      %v697 = vadd.f32 0.0, %v696
      %698 = vmatmul.bf16.gmra.mxu0 %v556
      %v699 = vpop.f32.mrf.mxu0
      %v700 = vadd.f32 0.0, %v699
      %v701 = vpop.f32.mrf.mxu0
      %v702 = vadd.f32 0.0, %v701
      %703 = vmatmul.bf16.gmra.mxu0 %v559
      %v704 = vpop.f32.mrf.mxu0
      %v705 = vadd.f32 0.0, %v704
      %v706 = vpop.f32.mrf.mxu0
      %v707 = vadd.f32 0.0, %v706
      %708 = vmatmul.bf16.gmra.mxu0 %v562
      %v709 = vpop.f32.mrf.mxu0
      %v710 = vadd.f32 0.0, %v709
      %v711 = vpop.f32.mrf.mxu0
      %v712 = vadd.f32 0.0, %v711
      %713 = vmatmul.bf16.gmra.mxu0 %v565
      %v714 = vpop.f32.mrf.mxu0
      %v715 = vadd.f32 0.0, %v714
      %v716 = vpop.f32.mrf.mxu0
      %v717 = vadd.f32 0.0, %v716
      %718 = vmatmul.bf16.gmra.mxu0 %v568
      %v719 = vpop.f32.mrf.mxu0
      %v720 = vadd.f32 0.0, %v719
      %v721 = vpop.f32.mrf.mxu0
      %v722 = vadd.f32 0.0, %v721
      %723 = vmatmul.bf16.gmra.mxu0 %v571
      %v724 = vpop.f32.mrf.mxu0
      %v725 = vadd.f32 0.0, %v724
      %v726 = vpop.f32.mrf.mxu0
      %v727 = vadd.f32 0.0, %v726
      %728 = vmatmul.bf16.gmra.mxu0 %v574
      %v729 = vpop.f32.mrf.mxu0
      %v730 = vadd.f32 0.0, %v729
      %v731 = vpop.f32.mrf.mxu0
      %v732 = vadd.f32 0.0, %v731
      %733 = vmatmul.bf16.gmra.mxu0 %v577
      %v734 = vpop.f32.mrf.mxu0
      %v735 = vadd.f32 0.0, %v734
      %v736 = vpop.f32.mrf.mxu0
      %v737 = vadd.f32 0.0, %v736
      %738 = vmatmul.bf16.gmra.mxu0 %v580
      %v739 = vpop.f32.mrf.mxu0
      %v740 = vadd.f32 0.0, %v739
      %v741 = vpop.f32.mrf.mxu0
      %v742 = vadd.f32 0.0, %v741
      %743 = vmatmul.bf16.gmra.mxu0 %v583
      %v744 = vpop.f32.mrf.mxu0
      %v745 = vadd.f32 0.0, %v744
      %v746 = vpop.f32.mrf.mxu0
      %v747 = vadd.f32 0.0, %v746
      %748 = vmatmul.bf16.gmra.mxu0 %v586
      %v749 = vpop.f32.mrf.mxu0
      %v750 = vadd.f32 0.0, %v749
      %v751 = vpop.f32.mrf.mxu0
      %v752 = vadd.f32 0.0, %v751
      %753 = vmatmul.bf16.gmra.mxu0 %v589
      %v754 = vpop.f32.mrf.mxu0
      %v755 = vadd.f32 0.0, %v754
      %v756 = vpop.f32.mrf.mxu0
      %v757 = vadd.f32 0.0, %v756
      %758 = vmatmul.bf16.gmra.mxu0 %v592
      %v759 = vpop.f32.mrf.mxu0
      %v760 = vadd.f32 0.0, %v759
      %v761 = vpop.f32.mrf.mxu0
      %v762 = vadd.f32 0.0, %v761
      %763 = vmatmul.bf16.gmra.mxu0 %v595
      %v764 = vpop.f32.mrf.mxu0
      %v765 = vadd.f32 0.0, %v764
      %v766 = vpop.f32.mrf.mxu0
      %v767 = vadd.f32 0.0, %v766
      %768 = vmatmul.bf16.gmra.mxu0 %v598
      %v769 = vpop.f32.mrf.mxu0
      %v770 = vadd.f32 0.0, %v769
      %v771 = vpop.f32.mrf.mxu0
      %v772 = vadd.f32 0.0, %v771
      %773 = vmatmul.bf16.gmra.mxu0 %v601
      %v774 = vpop.f32.mrf.mxu0
      %v775 = vadd.f32 0.0, %v774
      %v776 = vpop.f32.mrf.mxu0
      %v777 = vadd.f32 0.0, %v776
      %778 = vdwg.mxu0
      %v779 = vld [vmem:[%s253] sm:$0x1]
      %v781 = vperm.slane %v779, 0
      %v783 = vmul.f32 %v620, %v781
      %v784 = vmul.f32 %v622, %v781
      %v785 = vmul.f32 %v625, %v781
      %v786 = vmul.f32 %v627, %v781
      %v787 = vmul.f32 %v630, %v781
      %v788 = vmul.f32 %v632, %v781
      %v789 = vmul.f32 %v635, %v781
      %v790 = vmul.f32 %v637, %v781
      %v791 = vmul.f32 %v640, %v781
      %v792 = vmul.f32 %v642, %v781
      %v793 = vmul.f32 %v645, %v781
      %v794 = vmul.f32 %v647, %v781
      %v795 = vmul.f32 %v650, %v781
      %v796 = vmul.f32 %v652, %v781
      %v797 = vmul.f32 %v655, %v781
      %v798 = vmul.f32 %v657, %v781
      %v799 = vmul.f32 %v660, %v781
      %v800 = vmul.f32 %v662, %v781
      %v801 = vmul.f32 %v665, %v781
      %v802 = vmul.f32 %v667, %v781
      %v803 = vmul.f32 %v670, %v781
      %v804 = vmul.f32 %v672, %v781
      %v805 = vmul.f32 %v675, %v781
      %v806 = vmul.f32 %v677, %v781
      %v807 = vmul.f32 %v680, %v781
      %v808 = vmul.f32 %v682, %v781
      %v809 = vmul.f32 %v685, %v781
      %v810 = vmul.f32 %v687, %v781
      %v811 = vmul.f32 %v690, %v781
      %v812 = vmul.f32 %v692, %v781
      %v813 = vmul.f32 %v695, %v781
      %v814 = vmul.f32 %v697, %v781
      %v815 = vmul.f32 %v700, %v781
      %v816 = vmul.f32 %v702, %v781
      %v817 = vmul.f32 %v705, %v781
      %v818 = vmul.f32 %v707, %v781
      %v819 = vmul.f32 %v710, %v781
      %v820 = vmul.f32 %v712, %v781
      %v821 = vmul.f32 %v715, %v781
      %v822 = vmul.f32 %v717, %v781
      %v823 = vmul.f32 %v720, %v781
      %v824 = vmul.f32 %v722, %v781
      %v825 = vmul.f32 %v725, %v781
      %v826 = vmul.f32 %v727, %v781
      %v827 = vmul.f32 %v730, %v781
      %v828 = vmul.f32 %v732, %v781
      %v829 = vmul.f32 %v735, %v781
      %v830 = vmul.f32 %v737, %v781
      %v831 = vmul.f32 %v740, %v781
      %v832 = vmul.f32 %v742, %v781
      %v833 = vmul.f32 %v745, %v781
      %v834 = vmul.f32 %v747, %v781
      %v835 = vmul.f32 %v750, %v781
      %v836 = vmul.f32 %v752, %v781
      %v837 = vmul.f32 %v755, %v781
      %v838 = vmul.f32 %v757, %v781
      %v839 = vmul.f32 %v760, %v781
      %v840 = vmul.f32 %v762, %v781
      %v841 = vmul.f32 %v765, %v781
      %v842 = vmul.f32 %v767, %v781
      %v843 = vmul.f32 %v770, %v781
      %v844 = vmul.f32 %v772, %v781
      %v845 = vmul.f32 %v775, %v781
      %v846 = vmul.f32 %v777, %v781
      %v847 = vld [vmem:[%s256] sm:$0x1]
      %v849 = vperm.slane %v847, 0
      %v851 = vadd.f32 %v783, %v849
      %v852 = vadd.f32 %v784, %v849
      %v853 = vadd.f32 %v785, %v849
      %v854 = vadd.f32 %v786, %v849
      %v855 = vadd.f32 %v787, %v849
      %v856 = vadd.f32 %v788, %v849
      %v857 = vadd.f32 %v789, %v849
      %v858 = vadd.f32 %v790, %v849
      %v859 = vadd.f32 %v791, %v849
      %v860 = vadd.f32 %v792, %v849
      %v861 = vadd.f32 %v793, %v849
      %v862 = vadd.f32 %v794, %v849
      %v863 = vadd.f32 %v795, %v849
      %v864 = vadd.f32 %v796, %v849
      %v865 = vadd.f32 %v797, %v849
      %v866 = vadd.f32 %v798, %v849
      %v867 = vadd.f32 %v799, %v849
      %v868 = vadd.f32 %v800, %v849
      %v869 = vadd.f32 %v801, %v849
      %v870 = vadd.f32 %v802, %v849
      %v871 = vadd.f32 %v803, %v849
      %v872 = vadd.f32 %v804, %v849
      %v873 = vadd.f32 %v805, %v849
      %v874 = vadd.f32 %v806, %v849
      %v875 = vadd.f32 %v807, %v849
      %v876 = vadd.f32 %v808, %v849
      %v877 = vadd.f32 %v809, %v849
      %v878 = vadd.f32 %v810, %v849
      %v879 = vadd.f32 %v811, %v849
      %v880 = vadd.f32 %v812, %v849
      %v881 = vadd.f32 %v813, %v849
      %v882 = vadd.f32 %v814, %v849
      %v883 = vadd.f32 %v815, %v849
      %v884 = vadd.f32 %v816, %v849
      %v885 = vadd.f32 %v817, %v849
      %v886 = vadd.f32 %v818, %v849
      %v887 = vadd.f32 %v819, %v849
      %v888 = vadd.f32 %v820, %v849
      %v889 = vadd.f32 %v821, %v849
      %v890 = vadd.f32 %v822, %v849
      %v891 = vadd.f32 %v823, %v849
      %v892 = vadd.f32 %v824, %v849
      %v893 = vadd.f32 %v825, %v849
      %v894 = vadd.f32 %v826, %v849
      %v895 = vadd.f32 %v827, %v849
      %v896 = vadd.f32 %v828, %v849
      %v897 = vadd.f32 %v829, %v849
      %v898 = vadd.f32 %v830, %v849
      %v899 = vadd.f32 %v831, %v849
      %v900 = vadd.f32 %v832, %v849
      %v901 = vadd.f32 %v833, %v849
      %v902 = vadd.f32 %v834, %v849
      %v903 = vadd.f32 %v835, %v849
      %v904 = vadd.f32 %v836, %v849
      %v905 = vadd.f32 %v837, %v849
      %v906 = vadd.f32 %v838, %v849
      %v907 = vadd.f32 %v839, %v849
      %v908 = vadd.f32 %v840, %v849
      %v909 = vadd.f32 %v841, %v849
      %v910 = vadd.f32 %v842, %v849
      %v911 = vadd.f32 %v843, %v849
      %v912 = vadd.f32 %v844, %v849
      %v913 = vadd.f32 %v845, %v849
      %v914 = vadd.f32 %v846, %v849
      %vm915 = vcmp.gt.f32.partialorder %v851, 0.0
      %vm916 = vcmp.gt.f32.partialorder %v852, 0.0
      %vm917 = vcmp.gt.f32.partialorder %v853, 0.0
      %vm918 = vcmp.gt.f32.partialorder %v854, 0.0
      %vm919 = vcmp.gt.f32.partialorder %v855, 0.0
      %vm920 = vcmp.gt.f32.partialorder %v856, 0.0
      %vm921 = vcmp.gt.f32.partialorder %v857, 0.0
      %vm922 = vcmp.gt.f32.partialorder %v858, 0.0
      %vm923 = vcmp.gt.f32.partialorder %v859, 0.0
      %vm924 = vcmp.gt.f32.partialorder %v860, 0.0
      %vm925 = vcmp.gt.f32.partialorder %v861, 0.0
      %vm926 = vcmp.gt.f32.partialorder %v862, 0.0
      %vm927 = vcmp.gt.f32.partialorder %v863, 0.0
      %vm928 = vcmp.gt.f32.partialorder %v864, 0.0
      %vm929 = vcmp.gt.f32.partialorder %v865, 0.0
      %vm930 = vcmp.gt.f32.partialorder %v866, 0.0
      %vm931 = vcmp.gt.f32.partialorder %v867, 0.0
      %vm932 = vcmp.gt.f32.partialorder %v868, 0.0
      %vm933 = vcmp.gt.f32.partialorder %v869, 0.0
      %vm934 = vcmp.gt.f32.partialorder %v870, 0.0
      %vm935 = vcmp.gt.f32.partialorder %v871, 0.0
      %vm936 = vcmp.gt.f32.partialorder %v872, 0.0
      %vm937 = vcmp.gt.f32.partialorder %v873, 0.0
      %vm938 = vcmp.gt.f32.partialorder %v874, 0.0
      %vm939 = vcmp.gt.f32.partialorder %v875, 0.0
      %vm940 = vcmp.gt.f32.partialorder %v876, 0.0
      %vm941 = vcmp.gt.f32.partialorder %v877, 0.0
      %vm942 = vcmp.gt.f32.partialorder %v878, 0.0
      %vm943 = vcmp.gt.f32.partialorder %v879, 0.0
      %vm944 = vcmp.gt.f32.partialorder %v880, 0.0
      %vm945 = vcmp.gt.f32.partialorder %v881, 0.0
      %vm946 = vcmp.gt.f32.partialorder %v882, 0.0
      %vm947 = vcmp.gt.f32.partialorder %v883, 0.0
      %vm948 = vcmp.gt.f32.partialorder %v884, 0.0
      %vm949 = vcmp.gt.f32.partialorder %v885, 0.0
      %vm950 = vcmp.gt.f32.partialorder %v886, 0.0
      %vm951 = vcmp.gt.f32.partialorder %v887, 0.0
      %vm952 = vcmp.gt.f32.partialorder %v888, 0.0
      %vm953 = vcmp.gt.f32.partialorder %v889, 0.0
      %vm954 = vcmp.gt.f32.partialorder %v890, 0.0
      %vm955 = vcmp.gt.f32.partialorder %v891, 0.0
      %vm956 = vcmp.gt.f32.partialorder %v892, 0.0
      %vm957 = vcmp.gt.f32.partialorder %v893, 0.0
      %vm958 = vcmp.gt.f32.partialorder %v894, 0.0
      %vm959 = vcmp.gt.f32.partialorder %v895, 0.0
      %vm960 = vcmp.gt.f32.partialorder %v896, 0.0
      %vm961 = vcmp.gt.f32.partialorder %v897, 0.0
      %vm962 = vcmp.gt.f32.partialorder %v898, 0.0
      %vm963 = vcmp.gt.f32.partialorder %v899, 0.0
      %vm964 = vcmp.gt.f32.partialorder %v900, 0.0
      %vm965 = vcmp.gt.f32.partialorder %v901, 0.0
      %vm966 = vcmp.gt.f32.partialorder %v902, 0.0
      %vm967 = vcmp.gt.f32.partialorder %v903, 0.0
      %vm968 = vcmp.gt.f32.partialorder %v904, 0.0
      %vm969 = vcmp.gt.f32.partialorder %v905, 0.0
      %vm970 = vcmp.gt.f32.partialorder %v906, 0.0
      %vm971 = vcmp.gt.f32.partialorder %v907, 0.0
      %vm972 = vcmp.gt.f32.partialorder %v908, 0.0
      %vm973 = vcmp.gt.f32.partialorder %v909, 0.0
      %vm974 = vcmp.gt.f32.partialorder %v910, 0.0
      %vm975 = vcmp.gt.f32.partialorder %v911, 0.0
      %vm976 = vcmp.gt.f32.partialorder %v912, 0.0
      %vm977 = vcmp.gt.f32.partialorder %v913, 0.0
      %vm978 = vcmp.gt.f32.partialorder %v914, 0.0
      %v979 = vmul.f32 %v851, 0.1
      %v980 = vmul.f32 %v852, 0.1
      %v981 = vmul.f32 %v853, 0.1
      %v982 = vmul.f32 %v854, 0.1
      %v983 = vmul.f32 %v855, 0.1
      %v984 = vmul.f32 %v856, 0.1
      %v985 = vmul.f32 %v857, 0.1
      %v986 = vmul.f32 %v858, 0.1
      %v987 = vmul.f32 %v859, 0.1
      %v988 = vmul.f32 %v860, 0.1
      %v989 = vmul.f32 %v861, 0.1
      %v990 = vmul.f32 %v862, 0.1
      %v991 = vmul.f32 %v863, 0.1
      %v992 = vmul.f32 %v864, 0.1
      %v993 = vmul.f32 %v865, 0.1
      %v994 = vmul.f32 %v866, 0.1
      %v995 = vmul.f32 %v867, 0.1
      %v996 = vmul.f32 %v868, 0.1
      %v997 = vmul.f32 %v869, 0.1
      %v998 = vmul.f32 %v870, 0.1
      %v999 = vmul.f32 %v871, 0.1
      %v1000 = vmul.f32 %v872, 0.1
      %v1001 = vmul.f32 %v873, 0.1
      %v1002 = vmul.f32 %v874, 0.1
      %v1003 = vmul.f32 %v875, 0.1
      %v1004 = vmul.f32 %v876, 0.1
      %v1005 = vmul.f32 %v877, 0.1
      %v1006 = vmul.f32 %v878, 0.1
      %v1007 = vmul.f32 %v879, 0.1
      %v1008 = vmul.f32 %v880, 0.1
      %v1009 = vmul.f32 %v881, 0.1
      %v1010 = vmul.f32 %v882, 0.1
      %v1011 = vmul.f32 %v883, 0.1
      %v1012 = vmul.f32 %v884, 0.1
      %v1013 = vmul.f32 %v885, 0.1
      %v1014 = vmul.f32 %v886, 0.1
      %v1015 = vmul.f32 %v887, 0.1
      %v1016 = vmul.f32 %v888, 0.1
      %v1017 = vmul.f32 %v889, 0.1
      %v1018 = vmul.f32 %v890, 0.1
      %v1019 = vmul.f32 %v891, 0.1
      %v1020 = vmul.f32 %v892, 0.1
      %v1021 = vmul.f32 %v893, 0.1
      %v1022 = vmul.f32 %v894, 0.1
      %v1023 = vmul.f32 %v895, 0.1
      %v1024 = vmul.f32 %v896, 0.1
      %v1025 = vmul.f32 %v897, 0.1
      %v1026 = vmul.f32 %v898, 0.1
      %v1027 = vmul.f32 %v899, 0.1
      %v1028 = vmul.f32 %v900, 0.1
      %v1029 = vmul.f32 %v901, 0.1
      %v1030 = vmul.f32 %v902, 0.1
      %v1031 = vmul.f32 %v903, 0.1
      %v1032 = vmul.f32 %v904, 0.1
      %v1033 = vmul.f32 %v905, 0.1
      %v1034 = vmul.f32 %v906, 0.1
      %v1035 = vmul.f32 %v907, 0.1
      %v1036 = vmul.f32 %v908, 0.1
      %v1037 = vmul.f32 %v909, 0.1
      %v1038 = vmul.f32 %v910, 0.1
      %v1039 = vmul.f32 %v911, 0.1
      %v1040 = vmul.f32 %v912, 0.1
      %v1041 = vmul.f32 %v913, 0.1
      %v1042 = vmul.f32 %v914, 0.1
      %v1043 = vsel %vm915, %v851, %v979
      %v1044 = vsel %vm916, %v852, %v980
      %v1045 = vsel %vm917, %v853, %v981
      %v1046 = vsel %vm918, %v854, %v982
      %v1047 = vsel %vm919, %v855, %v983
      %v1048 = vsel %vm920, %v856, %v984
      %v1049 = vsel %vm921, %v857, %v985
      %v1050 = vsel %vm922, %v858, %v986
      %v1051 = vsel %vm923, %v859, %v987
      %v1052 = vsel %vm924, %v860, %v988
      %v1053 = vsel %vm925, %v861, %v989
      %v1054 = vsel %vm926, %v862, %v990
      %v1055 = vsel %vm927, %v863, %v991
      %v1056 = vsel %vm928, %v864, %v992
      %v1057 = vsel %vm929, %v865, %v993
      %v1058 = vsel %vm930, %v866, %v994
      %v1059 = vsel %vm931, %v867, %v995
      %v1060 = vsel %vm932, %v868, %v996
      %v1061 = vsel %vm933, %v869, %v997
      %v1062 = vsel %vm934, %v870, %v998
      %v1063 = vsel %vm935, %v871, %v999
      %v1064 = vsel %vm936, %v872, %v1000
      %v1065 = vsel %vm937, %v873, %v1001
      %v1066 = vsel %vm938, %v874, %v1002
      %v1067 = vsel %vm939, %v875, %v1003
      %v1068 = vsel %vm940, %v876, %v1004
      %v1069 = vsel %vm941, %v877, %v1005
      %v1070 = vsel %vm942, %v878, %v1006
      %v1071 = vsel %vm943, %v879, %v1007
      %v1072 = vsel %vm944, %v880, %v1008
      %v1073 = vsel %vm945, %v881, %v1009
      %v1074 = vsel %vm946, %v882, %v1010
      %v1075 = vsel %vm947, %v883, %v1011
      %v1076 = vsel %vm948, %v884, %v1012
      %v1077 = vsel %vm949, %v885, %v1013
      %v1078 = vsel %vm950, %v886, %v1014
      %v1079 = vsel %vm951, %v887, %v1015
      %v1080 = vsel %vm952, %v888, %v1016
      %v1081 = vsel %vm953, %v889, %v1017
      %v1082 = vsel %vm954, %v890, %v1018
      %v1083 = vsel %vm955, %v891, %v1019
      %v1084 = vsel %vm956, %v892, %v1020
      %v1085 = vsel %vm957, %v893, %v1021
      %v1086 = vsel %vm958, %v894, %v1022
      %v1087 = vsel %vm959, %v895, %v1023
      %v1088 = vsel %vm960, %v896, %v1024
      %v1089 = vsel %vm961, %v897, %v1025
      %v1090 = vsel %vm962, %v898, %v1026
      %v1091 = vsel %vm963, %v899, %v1027
      %v1092 = vsel %vm964, %v900, %v1028
      %v1093 = vsel %vm965, %v901, %v1029
      %v1094 = vsel %vm966, %v902, %v1030
      %v1095 = vsel %vm967, %v903, %v1031
      %v1096 = vsel %vm968, %v904, %v1032
      %v1097 = vsel %vm969, %v905, %v1033
      %v1098 = vsel %vm970, %v906, %v1034
      %v1099 = vsel %vm971, %v907, %v1035
      %v1100 = vsel %vm972, %v908, %v1036
      %v1101 = vsel %vm973, %v909, %v1037
      %v1102 = vsel %vm974, %v910, %v1038
      %v1103 = vsel %vm975, %v911, %v1039
      %v1104 = vsel %vm976, %v912, %v1040
      %v1105 = vsel %vm977, %v913, %v1041
      %v1106 = vsel %vm978, %v914, %v1042
      %v1107 = vpack.c.bf16 %v1043, %v1043
      %v1108 = vpack.c.bf16 %v1044, %v1044
      %v1109 = vpack.c.bf16 %v1045, %v1045
      %v1110 = vpack.c.bf16 %v1046, %v1046
      %v1111 = vpack.c.bf16 %v1047, %v1047
      %v1112 = vpack.c.bf16 %v1048, %v1048
      %v1113 = vpack.c.bf16 %v1049, %v1049
      %v1114 = vpack.c.bf16 %v1050, %v1050
      %v1115 = vpack.c.bf16 %v1051, %v1051
      %v1116 = vpack.c.bf16 %v1052, %v1052
      %v1117 = vpack.c.bf16 %v1053, %v1053
      %v1118 = vpack.c.bf16 %v1054, %v1054
      %v1119 = vpack.c.bf16 %v1055, %v1055
      %v1120 = vpack.c.bf16 %v1056, %v1056
      %v1121 = vpack.c.bf16 %v1057, %v1057
      %v1122 = vpack.c.bf16 %v1058, %v1058
      %v1123 = vpack.c.bf16 %v1059, %v1059
      %v1124 = vpack.c.bf16 %v1060, %v1060
      %v1125 = vpack.c.bf16 %v1061, %v1061
      %v1126 = vpack.c.bf16 %v1062, %v1062
      %v1127 = vpack.c.bf16 %v1063, %v1063
      %v1128 = vpack.c.bf16 %v1064, %v1064
      %v1129 = vpack.c.bf16 %v1065, %v1065
      %v1130 = vpack.c.bf16 %v1066, %v1066
      %v1131 = vpack.c.bf16 %v1067, %v1067
      %v1132 = vpack.c.bf16 %v1068, %v1068
      %v1133 = vpack.c.bf16 %v1069, %v1069
      %v1134 = vpack.c.bf16 %v1070, %v1070
      %v1135 = vpack.c.bf16 %v1071, %v1071
      %v1136 = vpack.c.bf16 %v1072, %v1072
      %v1137 = vpack.c.bf16 %v1073, %v1073
      %v1138 = vpack.c.bf16 %v1074, %v1074
      %v1139 = vpack.c.bf16 %v1075, %v1075
      %v1140 = vpack.c.bf16 %v1076, %v1076
      %v1141 = vpack.c.bf16 %v1077, %v1077
      %v1142 = vpack.c.bf16 %v1078, %v1078
      %v1143 = vpack.c.bf16 %v1079, %v1079
      %v1144 = vpack.c.bf16 %v1080, %v1080
      %v1145 = vpack.c.bf16 %v1081, %v1081
      %v1146 = vpack.c.bf16 %v1082, %v1082
      %v1147 = vpack.c.bf16 %v1083, %v1083
      %v1148 = vpack.c.bf16 %v1084, %v1084
      %v1149 = vpack.c.bf16 %v1085, %v1085
      %v1150 = vpack.c.bf16 %v1086, %v1086
      %v1151 = vpack.c.bf16 %v1087, %v1087
      %v1152 = vpack.c.bf16 %v1088, %v1088
      %v1153 = vpack.c.bf16 %v1089, %v1089
      %v1154 = vpack.c.bf16 %v1090, %v1090
      %v1155 = vpack.c.bf16 %v1091, %v1091
      %v1156 = vpack.c.bf16 %v1092, %v1092
      %v1157 = vpack.c.bf16 %v1093, %v1093
      %v1158 = vpack.c.bf16 %v1094, %v1094
      %v1159 = vpack.c.bf16 %v1095, %v1095
      %v1160 = vpack.c.bf16 %v1096, %v1096
      %v1161 = vpack.c.bf16 %v1097, %v1097
      %v1162 = vpack.c.bf16 %v1098, %v1098
      %v1163 = vpack.c.bf16 %v1099, %v1099
      %v1164 = vpack.c.bf16 %v1100, %v1100
      %v1165 = vpack.c.bf16 %v1101, %v1101
      %v1166 = vpack.c.bf16 %v1102, %v1102
      %v1167 = vpack.c.bf16 %v1103, %v1103
      %v1168 = vpack.c.bf16 %v1104, %v1104
      %v1169 = vpack.c.bf16 %v1105, %v1105
      %v1170 = vpack.c.bf16 %v1106, %v1106
      %vm1171 = vcmask 257024
      %1172 = vst.msk [vmem:[%s264] sm:$0xf] %vm1171, %v1107
      %1173 = vst.msk [vmem:[%s264 + $0x4] sm:$0xf] %vm1171, %v1108
      %1174 = vst.msk [vmem:[%s264 + $0x8] sm:$0xf] %vm1171, %v1109
      %1175 = vst.msk [vmem:[%s264 + $0xc] sm:$0xf] %vm1171, %v1110
      %1176 = vst.msk [vmem:[%s264 + $0x10] sm:$0xf] %vm1171, %v1111
      %1177 = vst.msk [vmem:[%s264 + $0x14] sm:$0xf] %vm1171, %v1112
      %1178 = vst.msk [vmem:[%s264 + $0x18] sm:$0xf] %vm1171, %v1113
      %1179 = vst.msk [vmem:[%s264 + $0x1c] sm:$0xf] %vm1171, %v1114
      %1180 = vst.msk [vmem:[%s264 + $0x20] sm:$0xf] %vm1171, %v1115
      %1181 = vst.msk [vmem:[%s264 + $0x24] sm:$0xf] %vm1171, %v1116
      %1182 = vst.msk [vmem:[%s264 + $0x28] sm:$0xf] %vm1171, %v1117
      %1183 = vst.msk [vmem:[%s264 + $0x2c] sm:$0xf] %vm1171, %v1118
      %1184 = vst.msk [vmem:[%s264 + $0x30] sm:$0xf] %vm1171, %v1119
      %1185 = vst.msk [vmem:[%s264 + $0x34] sm:$0xf] %vm1171, %v1120
      %1186 = vst.msk [vmem:[%s264 + $0x38] sm:$0xf] %vm1171, %v1121
      %1187 = vst.msk [vmem:[%s264 + $0x3c] sm:$0xf] %vm1171, %v1122
      %1188 = vst.msk [vmem:[%s264 + $0x40] sm:$0xf] %vm1171, %v1123
      %1189 = vst.msk [vmem:[%s264 + $0x44] sm:$0xf] %vm1171, %v1124
      %1190 = vst.msk [vmem:[%s264 + $0x48] sm:$0xf] %vm1171, %v1125
      %1191 = vst.msk [vmem:[%s264 + $0x4c] sm:$0xf] %vm1171, %v1126
      %1192 = vst.msk [vmem:[%s264 + $0x50] sm:$0xf] %vm1171, %v1127
      %1193 = vst.msk [vmem:[%s264 + $0x54] sm:$0xf] %vm1171, %v1128
      %1194 = vst.msk [vmem:[%s264 + $0x58] sm:$0xf] %vm1171, %v1129
      %1195 = vst.msk [vmem:[%s264 + $0x5c] sm:$0xf] %vm1171, %v1130
      %1196 = vst.msk [vmem:[%s264 + $0x60] sm:$0xf] %vm1171, %v1131
      %1197 = vst.msk [vmem:[%s264 + $0x64] sm:$0xf] %vm1171, %v1132
      %1198 = vst.msk [vmem:[%s264 + $0x68] sm:$0xf] %vm1171, %v1133
      %1199 = vst.msk [vmem:[%s264 + $0x6c] sm:$0xf] %vm1171, %v1134
      %1200 = vst.msk [vmem:[%s264 + $0x70] sm:$0xf] %vm1171, %v1135
      %1201 = vst.msk [vmem:[%s264 + $0x74] sm:$0xf] %vm1171, %v1136
      %1202 = vst.msk [vmem:[%s264 + $0x78] sm:$0xf] %vm1171, %v1137
      %1203 = vst.msk [vmem:[%s264 + $0x7c] sm:$0xf] %vm1171, %v1138
      %1204 = vst.msk [vmem:[%s264 + $0x80] sm:$0xf] %vm1171, %v1139
      %1205 = vst.msk [vmem:[%s264 + $0x84] sm:$0xf] %vm1171, %v1140
      %1206 = vst.msk [vmem:[%s264 + $0x88] sm:$0xf] %vm1171, %v1141
      %1207 = vst.msk [vmem:[%s264 + $0x8c] sm:$0xf] %vm1171, %v1142
      %1208 = vst.msk [vmem:[%s264 + $0x90] sm:$0xf] %vm1171, %v1143
      %1209 = vst.msk [vmem:[%s264 + $0x94] sm:$0xf] %vm1171, %v1144
      %1210 = vst.msk [vmem:[%s264 + $0x98] sm:$0xf] %vm1171, %v1145
      %1211 = vst.msk [vmem:[%s264 + $0x9c] sm:$0xf] %vm1171, %v1146
      %1212 = vst.msk [vmem:[%s264 + $0xa0] sm:$0xf] %vm1171, %v1147
      %1213 = vst.msk [vmem:[%s264 + $0xa4] sm:$0xf] %vm1171, %v1148
      %1214 = vst.msk [vmem:[%s264 + $0xa8] sm:$0xf] %vm1171, %v1149
      %1215 = vst.msk [vmem:[%s264 + $0xac] sm:$0xf] %vm1171, %v1150
      %1216 = vst.msk [vmem:[%s264 + $0xb0] sm:$0xf] %vm1171, %v1151
      %1217 = vst.msk [vmem:[%s264 + $0xb4] sm:$0xf] %vm1171, %v1152
      %1218 = vst.msk [vmem:[%s264 + $0xb8] sm:$0xf] %vm1171, %v1153
      %1219 = vst.msk [vmem:[%s264 + $0xbc] sm:$0xf] %vm1171, %v1154
      %1220 = vst.msk [vmem:[%s264 + $0xc0] sm:$0xf] %vm1171, %v1155
      %1221 = vst.msk [vmem:[%s264 + $0xc4] sm:$0xf] %vm1171, %v1156
      %1222 = vst.msk [vmem:[%s264 + $0xc8] sm:$0xf] %vm1171, %v1157
      %1223 = vst.msk [vmem:[%s264 + $0xcc] sm:$0xf] %vm1171, %v1158
      %1224 = vst.msk [vmem:[%s264 + $0xd0] sm:$0xf] %vm1171, %v1159
      %1225 = vst.msk [vmem:[%s264 + $0xd4] sm:$0xf] %vm1171, %v1160
      %1226 = vst.msk [vmem:[%s264 + $0xd8] sm:$0xf] %vm1171, %v1161
      %1227 = vst.msk [vmem:[%s264 + $0xdc] sm:$0xf] %vm1171, %v1162
      %1228 = vst.msk [vmem:[%s264 + $0xe0] sm:$0xf] %vm1171, %v1163
      %1229 = vst.msk [vmem:[%s264 + $0xe4] sm:$0xf] %vm1171, %v1164
      %1230 = vst.msk [vmem:[%s264 + $0xe8] sm:$0xf] %vm1171, %v1165
      %1231 = vst.msk [vmem:[%s264 + $0xec] sm:$0xf] %vm1171, %v1166
      %1232 = vst.msk [vmem:[%s264 + $0xf0] sm:$0xf] %vm1171, %v1167
      %1233 = vst.msk [vmem:[%s264 + $0xf4] sm:$0xf] %vm1171, %v1168
      %1234 = vst.msk [vmem:[%s264 + $0xf8] sm:$0xf] %vm1171, %v1169
      %1235 = vst.msk [vmem:[%s264 + $0xfc] sm:$0xf] %vm1171, %v1170
      %s1236 = smul.u32 64, %s19
      %p1237 = scmp.lt.s32.totalorder %s1236, 511
      %s1238 = scalar_select %p1237, %s1236, 511
      %p1239 = scmp.lt.s32.totalorder %s20, 0
      %s1240 = scalar_select %p1239, %s20, 0
      %s1241 = sadd.s32 %s1240, %s1238
      %s1242 = smul.addr %s1241, 4
      %s1243 = scalar_lea.vmem %s4, %s1242
      // Predicated region
      $region37: #{tpu_custom_call.1} parent=35 // pred_check
        %p1244 = pneg %p151
      $region38: #{tpu_custom_call.1} parent=35 // pred_check_branch
        %1246 = sbr.rel (%p1244) target = $region40
      $region39: #{tpu_custom_call.1} parent=35 // pred_region
        %s1247 = smul.u32 64, %s19
      $region40: #{tpu_custom_call.1} parent=35 // pred_fallthru
        _
    $region36: #{tpu_custom_call.1} parent=5 // pred_fallthru
      _
    %p1248 = scmp.le.s32.totalorder 2, %s10
    // Predicated region
    $region41: #{tpu_custom_call.1} parent=5 // pred_check
      %p1249 = pneg %p1248
    $region42: #{tpu_custom_call.1} parent=5 // pred_check_branch
      %1251 = sbr.rel (%p1249) target = $region44
    $region43: #{tpu_custom_call.1} parent=5 // pred_region
      %s1252 = ssub.s32 %s10, 2
      // Predicated region
      $region45: #{tpu_custom_call.1} parent=43 // pred_check
        %p1253 = pneg %p157
      $region46: #{tpu_custom_call.1} parent=43 // pred_check_branch
        %1255 = sbr.rel (%p1253) target = $region48
      $region47: #{tpu_custom_call.1} parent=43 // pred_region
        %s1256 = smul.u32 64, %s21
        %p1257 = scmp.lt.s32.totalorder %s1256, 511
        %s1258 = scalar_select %p1257, %s1256, 511
        %p1259 = scmp.lt.s32.totalorder %s22, 0
        %s1260 = scalar_select %p1259, %s22, 0
        %s1261 = sadd.s32 %s1260, %s1258
        %s1262 = smul.addr %s1261, 4
        %s1263 = scalar_lea.vmem %s4, %s1262
      $region48: #{tpu_custom_call.1} parent=43 // pred_fallthru
        _
    $region44: #{tpu_custom_call.1} parent=5 // pred_fallthru
      _
  $region6: #{tpu_custom_call.1} parent=0 // loop_footer
    %s14 = sadd.s32 1, %s10
  $region7: #{tpu_custom_call.1} parent=0 // loop_footer_branch
    %9 = sbr.rel target = $region3
  $region8: #{tpu_custom_call.1} parent=0 // loop_exit
    _

</llo_original>
